<compile_context>
chip_gen: v7x
topology: tpu7x:2x2x1
jax: 0.10.0
libtpu: 0.0.40
codegen_flags: <defaults>
</compile_context>

<pallas_src>
import functools

import jax
import jax.numpy as jnp
from jax import lax
from jax.experimental import pallas as pl
from jax.experimental.pallas import tpu as pltpu

_LANES = 128
_ACC_SUBLANES = 8
_BLOCK_ROWS_1CORE = 2048      # 1 MiB f32 per input per buffer
_BLOCK_ROWS_2CORE = 4096      # 2 MiB; still far under scoped VMEM defaults


def _round_up(x, m):
    return ((x + m - 1) // m) * m


def _sublane_multiple(dtype):
    # Sub-32-bit dtypes pack along sublanes: min tile (8,128) f32,
    # (16,128) bf16, (32,128) int8/fp8.
    itemsize = jnp.dtype(dtype).itemsize
    return max(8, 32 // max(int(itemsize), 1))


def _num_tensorcores():
    """2 on v7x-class chips (2 TensorCores/chip), else 1 (v5e/v6e)."""
    if not hasattr(pltpu, "CORE_PARALLEL"):
        return 1
    try:
        kind = jax.devices()[0].device_kind.lower()
    except Exception:
        return 1
    return 2 if ("v7" in kind or "7x" in kind) else 1


def _mse_sum_kernel(x_ref, t_ref, out_ref, acc_ref, *,
                    weight, block_rows, valid_rows, full_blocks,
                    steps_per_core, need_mask):
    """Accumulates sum((x*w - t)^2) per core; epilogue writes the partial."""
    c = pl.program_id(0)        # core axis (size 1 on single-TC chips)
    j = pl.program_id(1)        # reduction axis

    @pl.when(j == 0)
    def _():
        acc_ref[...] = jnp.zeros_like(acc_ref)

    x = x_ref[...].astype(jnp.float32)
    t = t_ref[...].astype(jnp.float32)
    diff = x * jnp.float32(weight) - t
    sq = diff * diff

    def _accumulate(v):
        # Per-vreg partial sums: pure VPU adds, no XLU in the steady state.
        acc_ref[...] += v.reshape(block_rows // _ACC_SUBLANES,
                                  _ACC_SUBLANES, _LANES).sum(axis=0)

    if need_mask:
        block_idx = c * steps_per_core + j

        @pl.when(block_idx < full_blocks)      # fully-valid block: no mask cost
        def _():
            _accumulate(sq)

        @pl.when(block_idx >= full_blocks)     # ragged tail / clamped duplicate
        def _():
            row_ids = block_idx * block_rows + lax.broadcasted_iota(
                jnp.int32, (block_rows, _LANES), 0)
            # select-form mask (NOT multiply) so garbage padding can't leak NaN
            _accumulate(jnp.where(row_ids < valid_rows, sq, jnp.float32(0.0)))
    else:
        _accumulate(sq)

    @pl.when(j == pl.num_programs(1) - 1)
    def _():
        # Single cross-lane/sublane reduce per core, written once to SMEM.
        out_ref[0, 0] = jnp.sum(acc_ref[...])


def _mse_sum_pallas(x2d, t2d, weight):
    """sum((x2d*weight - t2d)^2) over lane-dense (M, 128) arrays."""
    m = x2d.shape[0]
    sub = max(_sublane_multiple(x2d.dtype), _sublane_multiple(t2d.dtype))
    ncores = _num_tensorcores()
    max_rows = _BLOCK_ROWS_2CORE if ncores > 1 else _BLOCK_ROWS_1CORE
    block_rows = min(_round_up(max_rows, sub), _round_up(m, sub))
    nblocks = pl.cdiv(m, block_rows)
    steps = pl.cdiv(nblocks, ncores)
    full_blocks = m // block_rows
    need_mask = (nblocks * block_rows != m) or (steps * ncores != nblocks)

    def idx_map(c, j):
        # Clamp so a short core's extra step DMAs an in-bounds block; the
        # in-kernel row mask zeroes its contribution.
        return (jnp.minimum(c * steps + j, nblocks - 1), 0)

    kernel = functools.partial(
        _mse_sum_kernel,
        weight=float(weight),
        block_rows=block_rows,
        valid_rows=m,
        full_blocks=full_blocks,
        steps_per_core=steps,
        need_mask=need_mask,
    )

    if ncores > 1:
        dim_sem = (pltpu.CORE_PARALLEL, pltpu.ARBITRARY)
    else:
        dim_sem = ("arbitrary", "arbitrary")

    partials = pl.pallas_call(
        kernel,
        out_shape=jax.ShapeDtypeStruct((ncores, 1), jnp.float32),
        grid_spec=pltpu.PrefetchScalarGridSpec(
            num_scalar_prefetch=0,
            grid=(ncores, steps),
            in_specs=[
                pl.BlockSpec((block_rows, _LANES), idx_map),   # x tile
                pl.BlockSpec((block_rows, _LANES), idx_map),   # target tile
            ],
            out_specs=pl.BlockSpec(
                (1, 1), lambda c, j: (c, 0),
                memory_space=pltpu.MemorySpace.SMEM),
            scratch_shapes=[pltpu.VMEM((_ACC_SUBLANES, _LANES), jnp.float32)],
        ),
        compiler_params=pltpu.CompilerParams(dimension_semantics=dim_sem),
    )(x2d, t2d)

    return jnp.sum(partials)


def _lane_split(a):
    """Flatten to a lane-aligned (M, 128) main view plus a <128-element tail."""
    flat = a.reshape(-1)
    n = flat.shape[0]
    n_main = (n // _LANES) * _LANES
    if n_main == 0:
        main = None
    elif n_main == n:
        main = flat.reshape(-1, _LANES)          # pure reshape, no copy
    else:
        # TODO(synk): this aligned-prefix slice copies ~numel elements when
        # numel % 128 != 0; a manual-DMA (pl.ANY) path would avoid it if that
        # shape class ever matters for real feature maps.
        main = flat[:n_main].reshape(-1, _LANES)
    tail = flat[n_main:] if n_main < n else None
    return main, tail, n


class ContentLoss:
    """JAX/Pallas port of the PyTorch ContentLoss module (forward pass)."""

    def __init__(self, target, weight):
        self.weight = float(weight)
        # __init__: self.target = target.detach() * weight   (one-time buffer)
        self.target = lax.stop_gradient(target) * self.weight
        # Hoisted to init (perf review): flatten/split the scaled target once.
        self._t_main, self._t_tail, self._numel = _lane_split(self.target)

    def __call__(self, x):
        return self.forward(x)

    def forward(self, x):
        x_main, x_tail, n = _lane_split(x)
        assert n == self._numel, "input/target element-count mismatch"

        total = jnp.float32(0.0)
        if x_main is not None:
            total = total + _mse_sum_pallas(x_main, self._t_main, self.weight)
        if x_tail is not None:
            d = (x_tail.astype(jnp.float32) * jnp.float32(self.weight)
                 - self._t_tail.astype(jnp.float32))
            total = total + jnp.sum(d * d)

        self.loss = total / jnp.float32(n)     # MSELoss default 'mean'
        self.output = x                        # identity pass-through
        return self.output

    # TODO(synk): ContentLoss.backward (autograd on self.loss) is training-side
    # machinery; gradients would come from jax.grad over this forward instead.


if __name__ == "__main__":
    key = jax.random.PRNGKey(0)
    k1, k2, k3, k4 = jax.random.split(key, 4)

    # Small NCHW shape consistent with a VGG-style feature map.
    N, C, H, W = 2, 4, 16, 16
    weight = 0.75

    x = jax.random.normal(k1, (N, C, H, W), dtype=jnp.float32)
    target = jax.random.normal(k2, (N, C, H, W), dtype=jnp.float32)

    cl = ContentLoss(target, weight)
    output = jax.block_until_ready(cl(x))
    loss = jax.block_until_ready(cl.loss)

    ref_loss = jnp.mean((x * weight - target * weight) ** 2)
    assert output.shape == x.shape
    assert bool(jnp.all(output == x))
    assert jnp.allclose(loss, ref_loss, rtol=1e-5, atol=1e-6), (loss, ref_loss)

    # Second check: lane-ragged element count exercises the masked edge block
    # and the plain-JAX tail path (no per-call padding copy of the input).
    shape2 = (3, 5, 9, 13)   # 1755 elements: 13 full lane rows + 91-elem tail
    x2 = jax.random.normal(k3, shape2, dtype=jnp.float32)
    t2 = jax.random.normal(k4, shape2, dtype=jnp.float32)
    cl2 = ContentLoss(t2, weight)
    out2 = jax.block_until_ready(cl2(x2))
    loss2 = jax.block_until_ready(cl2.loss)
    ref2 = jnp.mean((x2 * weight - t2 * weight) ** 2)
    assert out2.shape == x2.shape
    assert jnp.allclose(loss2, ref2, rtol=1e-5, atol=1e-6), (loss2, ref2)

    print("KERNEL_OK")
</pallas_src>

<mosaic_0001>
module attributes {stable_mosaic.version = 11 : i64} {
  func.func @_mse_sum_kernel(%arg0: i32, %arg1: i32, %arg2: memref<16x128xf32, #tpu.memory_space<vmem>>, %arg3: memref<16x128xf32, #tpu.memory_space<vmem>>, %arg4: memref<1x1xf32, #tpu.memory_space<smem>>, %arg5: memref<8x128xf32, #tpu.memory_space<vmem>>) attributes {dimension_semantics = [#tpu.dimension_semantics<arbitrary>, #tpu.dimension_semantics<arbitrary>], iteration_bounds = array<i64: 1, 1>, scalar_prefetch = 0 : i64, scratch_operands = 1 : i64, tpu.core_type = #tpu.core_type<tc>, window_params = [{transform_indices = @transform_0, window_bounds = array<i64: 16, 128>}, {transform_indices = @transform_1, window_bounds = array<i64: 16, 128>}, {transform_indices = @transform_2, window_bounds = array<i64: 1, 1>}]} {
    %c0_i32 = arith.constant 0 : i32
    %0 = arith.cmpi eq, %arg1, %c0_i32 : i32
    %1 = arith.extui %0 : i1 to i32
    %c0_i32_0 = arith.constant 0 : i32
    %2 = arith.cmpi ne, %1, %c0_i32_0 : i32
    scf.if %2 {
      %cst_11 = arith.constant 0.000000e+00 : f32
      %17 = vector.broadcast %cst_11 : f32 to vector<8x128xf32>
      %c0_12 = arith.constant 0 : index
      %c0_13 = arith.constant 0 : index
      %18 = vector.load %arg5[%c0_12, %c0_13] : memref<8x128xf32, #tpu.memory_space<vmem>>, vector<8x128xf32>
      tpu.vector_store %arg5[%c0_12, %c0_13], %17 {strides = array<i32>} : memref<8x128xf32, #tpu.memory_space<vmem>>, vector<8x128xf32>,
    } else {
    }
    %c0 = arith.constant 0 : index
    %c0_1 = arith.constant 0 : index
    %3 = vector.load %arg2[%c0, %c0_1] : memref<16x128xf32, #tpu.memory_space<vmem>>, vector<16x128xf32>
    %c0_2 = arith.constant 0 : index
    %c0_3 = arith.constant 0 : index
    %4 = vector.load %arg3[%c0_2, %c0_3] : memref<16x128xf32, #tpu.memory_space<vmem>>, vector<16x128xf32>
    %cst = arith.constant 7.500000e-01 : f32
    %5 = vector.broadcast %cst : f32 to vector<16x128xf32>
    %6 = arith.mulf %3, %5 : vector<16x128xf32>
    %7 = arith.subf %6, %4 : vector<16x128xf32>
    %8 = arith.mulf %7, %7 : vector<16x128xf32>
    %c0_4 = arith.constant 0 : index
    %c0_5 = arith.constant 0 : index
    %9 = vector.load %arg5[%c0_4, %c0_5] : memref<8x128xf32, #tpu.memory_space<vmem>>, vector<8x128xf32>
    %10 = vector.shape_cast %8 : vector<16x128xf32> to vector<2x8x128xf32>
    %cst_6 = arith.constant dense<0.000000e+00> : vector<8x128xf32>
    %11 = vector.multi_reduction <add>, %10, %cst_6 [0] : vector<2x8x128xf32> to vector<8x128xf32>
    %12 = arith.addf %9, %11 : vector<8x128xf32>
    %c0_7 = arith.constant 0 : index
    %c0_8 = arith.constant 0 : index
    %13 = vector.load %arg5[%c0_7, %c0_8] : memref<8x128xf32, #tpu.memory_space<vmem>>, vector<8x128xf32>
    tpu.vector_store %arg5[%c0_7, %c0_8], %12 {strides = array<i32>} : memref<8x128xf32, #tpu.memory_space<vmem>>, vector<8x128xf32>,
    %c0_i32_9 = arith.constant 0 : i32
    %14 = arith.cmpi eq, %arg1, %c0_i32_9 : i32
    %15 = arith.extui %14 : i1 to i32
    %c0_i32_10 = arith.constant 0 : i32
    %16 = arith.cmpi ne, %15, %c0_i32_10 : i32
    scf.if %16 {
      %c0_11 = arith.constant 0 : index
      %c0_12 = arith.constant 0 : index
      %17 = vector.load %arg5[%c0_11, %c0_12] : memref<8x128xf32, #tpu.memory_space<vmem>>, vector<8x128xf32>
      %18 = vector.shape_cast %17 : vector<8x128xf32> to vector<1x8x128xf32>
      %cst_13 = arith.constant dense<0.000000e+00> : vector<1xf32>
      %19 = vector.multi_reduction <add>, %18, %cst_13 [1, 2] : vector<1x8x128xf32> to vector<1xf32>
      %20 = vector.shape_cast %19 : vector<1xf32> to vector<1x1x1xf32>
      %21 = vector.extract %20[0, 0, 0] : f32 from vector<1x1x1xf32>
      %c0_14 = arith.constant 0 : index
      %c0_15 = arith.constant 0 : index
      %22 = memref.load %arg4[%c0_14, %c0_15] : memref<1x1xf32, #tpu.memory_space<smem>>
      memref.store %21, %arg4[%c0_14, %c0_15] : memref<1x1xf32, #tpu.memory_space<smem>>
    } else {
    }
    return
  }
  func.func @transform_0(%arg0: i32, %arg1: i32) -> (i32, i32) {
    %c1_i32 = arith.constant 1 : i32
    %0 = arith.muli %arg0, %c1_i32 : i32
    %1 = arith.addi %0, %arg1 : i32
    %c0_i32 = arith.constant 0 : i32
    %2 = arith.minsi %1, %c0_i32 : i32
    %c0_i32_0 = arith.constant 0 : i32
    %c0_i32_1 = arith.constant 0 : i32
    return %2, %c0_i32_0 : i32, i32
  }
  func.func @transform_1(%arg0: i32, %arg1: i32) -> (i32, i32) {
    %c1_i32 = arith.constant 1 : i32
    %0 = arith.muli %arg0, %c1_i32 : i32
    %1 = arith.addi %0, %arg1 : i32
    %c0_i32 = arith.constant 0 : i32
    %2 = arith.minsi %1, %c0_i32 : i32
    %c0_i32_0 = arith.constant 0 : i32
    %c0_i32_1 = arith.constant 0 : i32
    return %2, %c0_i32_0 : i32, i32
  }
  func.func @transform_2(%arg0: i32, %arg1: i32) -> (i32, i32) {
    %c0_i32 = arith.constant 0 : i32
    %c0_i32_0 = arith.constant 0 : i32
    return %arg0, %c0_i32 : i32, i32
  }
}

</mosaic_0001>

<llo_original>
// kernel: tpu_custom_call.1
$region0: #{tpu_custom_call.1}
  #allocation0 [shape = 'u32[]', space=smem, size = 0x4, offset = 0x4, fixed_abs, tag = 'smem constant byte address 0x4 - core index']
  #allocation1 [shape = 'u32[144,128]{1,0:T(1,128)}', space=vmem, size = 0x12000, scoped, tag = 'internal scratch']
  #allocation2 [shape = 'f32[8,128]{1,0:T(8,128)}', space=vmem, size = 0x1000, scoped, tag = 'scratch operand']
  %s0 = inlined_call_operand.hbm [shape: f32[16,128], index: 0, kind: input, shape index: {}]
  %s1 = inlined_call_operand.hbm [shape: f32[16,128], index: 1, kind: input, shape index: {}]
  %s2 = inlined_call_operand.hbm [shape: f32[1,1], index: 2, kind: output, shape index: {}]
  %s3 = sld [smem:[#allocation0]]
  $region34: #{tpu_custom_call.1} parent=0
    _
  %s5 = ssub.s32 1, %s3
  %s6 = scalar_select 0, %s5, %s3
  $region1: #{tpu_custom_call.1} parent=0
    #allocation3 [shape = 'u8[8192]{0}', space=vmem, size = 0x2000, scoped, tag = 'input window, operand 0, single buffered']
    #allocation4 [shape = 's32[1]{0}', space=sflag, size = 0x4, scoped, tag = 'scoped memory for tpu_custom_call.1']
    #allocation5 [shape = 's32[1]{0}', space=sflag, size = 0x4, scoped, tag = 'scoped memory for tpu_custom_call.1']
    #allocation6 [shape = 'u8[8192]{0}', space=vmem, size = 0x2000, scoped, tag = 'input window, operand 1, single buffered']
    #allocation7 [shape = 's32[1]{0}', space=sflag, size = 0x4, scoped, tag = 'scoped memory for tpu_custom_call.1']
    #allocation8 [shape = 'u8[512]{0}', space=smem, size = 0x200, scoped, tag = 'output window, operand 0, single buffered']
    %7 = vsyncpa [#allocation4], 0
    %8 = vsyncpa [#allocation7], 0
    %9 = vsyncpa [#allocation5], 0
    // Predicated region
    $region2: #{tpu_custom_call.1} parent=1 // pred_check
      _
    $region3: #{tpu_custom_call.1} parent=1 // pred_check_branch
      %11 = sbr.rel (0) target = $region5
    $region4: #{tpu_custom_call.1} parent=1 // pred_region
      %s12 = sadd.s32 0, 0
      %p13 = scmp.lt.s32.totalorder %s12, 0
      %s14 = scalar_select %p13, %s12, 0
      %s15 = smul.u32 2, %s14
      %s17 = ssub.s32 256, 256
      %18 = vsyncadd [#allocation4], %s17
      %s19 = smul.addr %s15, 128
      %s20 = scalar_lea.hbm %s0, %s19
      %s21 = sshll.u32 [#allocation3], 4
      %s22 = int_to_ptr.vmem [resolvable:$true] %s21
      %27 = dma.hbm_to_vmem [thread:$0]  %s20, 256, %s22, [#allocation4], 128, 128, 8
    $region5: #{tpu_custom_call.1} parent=1 // pred_fallthru
      _
    // Predicated region
    $region6: #{tpu_custom_call.1} parent=1 // pred_check
      _
    $region7: #{tpu_custom_call.1} parent=1 // pred_check_branch
      %29 = sbr.rel (0) target = $region9
    $region8: #{tpu_custom_call.1} parent=1 // pred_region
      %s30 = sadd.s32 0, 0
      %p31 = scmp.lt.s32.totalorder %s30, 0
      %s32 = scalar_select %p31, %s30, 0
      %s33 = smul.u32 2, %s32
      %s35 = ssub.s32 256, 256
      %36 = vsyncadd [#allocation7], %s35
      %s37 = smul.addr %s33, 128
      %s38 = scalar_lea.hbm %s1, %s37
      %s39 = sshll.u32 [#allocation6], 4
      %s40 = int_to_ptr.vmem [resolvable:$true] %s39
      %45 = dma.hbm_to_vmem [thread:$0]  %s38, 256, %s40, [#allocation7], 128, 128, 8
    $region9: #{tpu_custom_call.1} parent=1 // pred_fallthru
      _
    // Predicated region
    $region10: #{tpu_custom_call.1} parent=1 // pred_check
      _
    $region11: #{tpu_custom_call.1} parent=1 // pred_check_branch
      %47 = sbr.rel (0) target = $region13
    $region12: #{tpu_custom_call.1} parent=1 // pred_region
      %48 = dma.done [#allocation4], 256
    $region13: #{tpu_custom_call.1} parent=1 // pred_fallthru
      _
    // Predicated region
    $region14: #{tpu_custom_call.1} parent=1 // pred_check
      _
    $region15: #{tpu_custom_call.1} parent=1 // pred_check_branch
      %50 = sbr.rel (0) target = $region17
    $region16: #{tpu_custom_call.1} parent=1 // pred_region
      %51 = dma.done [#allocation7], 256
    $region17: #{tpu_custom_call.1} parent=1 // pred_fallthru
      _
    %s52 = sadd.s32 0, 0
    %p53 = scmp.lt.s32.totalorder %s52, 0
    %s54 = scalar_select %p53, %s52, 0
    %s55 = smul.u32 2, %s54
    %s56 = sadd.s32 0, 0
    %p57 = scmp.lt.s32.totalorder %s56, 0
    %s58 = scalar_select %p57, %s56, 0
    %s59 = smul.u32 2, %s58
    %p60 = scmp.eq.s32.totalorder 0, 0
    // Predicated region
    $region18: #{tpu_custom_call.1} parent=1 // pred_check
      %p61 = pneg %p60
    $region19: #{tpu_custom_call.1} parent=1 // pred_check_branch
      %63 = sbr.rel (%p61) target = $region21
    $region20: #{tpu_custom_call.1} parent=1 // pred_region
      %64 = vst [vmem:[#allocation2] sm:$0xff] 0.0
    $region21: #{tpu_custom_call.1} parent=1 // pred_fallthru
      _
    %v65 = vld [vmem:[#allocation3] sm:$0xff]
    %v66 = vld [vmem:[#allocation3 + $0x8] sm:$0xff]
    %v67 = vld [vmem:[#allocation6] sm:$0xff]
    %v68 = vld [vmem:[#allocation6 + $0x8] sm:$0xff]
    %v69 = vmul.f32 %v65, 0.75
    %v70 = vmul.f32 %v66, 0.75
    %v71 = vsub.f32 %v69, %v67
    %v72 = vsub.f32 %v70, %v68
    %v73 = vmul.f32 %v71, %v71
    %v74 = vmul.f32 %v72, %v72
    %v75 = vld [vmem:[#allocation2] sm:$0xff]
    %v76 = vadd.f32 %v73, %v74
    %v77 = vadd.f32 %v75, %v76
    %78 = vst [vmem:[#allocation2] sm:$0xff] %v77
    // Predicated region
    $region22: #{tpu_custom_call.1} parent=1 // pred_check
      %p79 = pneg %p60
    $region23: #{tpu_custom_call.1} parent=1 // pred_check_branch
      %81 = sbr.rel (%p79) target = $region25
    $region24: #{tpu_custom_call.1} parent=1 // pred_region
      %v82 = vld [vmem:[#allocation2] sm:$0xff]
      %83 = vadd.xlane.f32.xlu0 %v82
      %v84 = vpop.xlane.xlu0 %83
      %v85 = vrot.slane %v84, 4
      %v86 = vadd.f32 %v84, %v85
      %v87 = vrot.slane %v86, 2
      %v88 = vadd.f32 %v86, %v87
      %v89 = vrot.slane %v88, 1
      %v90 = vadd.f32 %v88, %v89
      %s91 = vtos %v90
      %s92 = scalar_lea.smem [#allocation8], 0
      %93 = sst [smem:[%s92]] %s91
    $region25: #{tpu_custom_call.1} parent=1 // pred_fallthru
      _
    // Predicated region
    $region26: #{tpu_custom_call.1} parent=1 // pred_check
      _
    $region27: #{tpu_custom_call.1} parent=1 // pred_check_branch
      %95 = sbr.rel (0) target = $region29
    $region28: #{tpu_custom_call.1} parent=1 // pred_region
      %s97 = ssub.s32 16, 16
      %98 = vsyncadd [#allocation5], %s97
      %101 = dma.smem_to_hbm [#allocation8], 16, %s2, [#allocation5]
    $region29: #{tpu_custom_call.1} parent=1 // pred_fallthru
      _
    // Predicated region
    $region30: #{tpu_custom_call.1} parent=1 // pred_check
      _
    $region31: #{tpu_custom_call.1} parent=1 // pred_check_branch
      %103 = sbr.rel (0) target = $region33
    $region32: #{tpu_custom_call.1} parent=1 // pred_region
      %104 = dma.done [#allocation5], 16
    $region33: #{tpu_custom_call.1} parent=1 // pred_fallthru
      _
    %105 = sfence
    %106 = vsyncpa [#allocation4], 1
    %107 = vsyncpa [#allocation7], 1
    %108 = vsyncpa [#allocation5], 1

</llo_original>
